<compile_context>
chip_gen: v7x
topology: tpu7x:2x2x1
jax: 0.10.0
libtpu: 0.0.40
codegen_flags: <defaults>
</compile_context>

<pallas_src>
import jax
import jax.numpy as jnp
from jax import lax
from jax.experimental import pallas as pl
from jax.experimental.pallas import tpu as pltpu


def mha_kernel(xq_ref, xkv_ref, wq_ref, wk_ref, wv_ref, wp_ref, bp_ref,
               o_ref, acc_ref):
    """One grid step = (batch b, query tile qi, head h); heads accumulate into acc_ref."""
    qi = pl.program_id(1)
    h = pl.program_id(2)

    @pl.when(h == 0)
    def _init():
        acc_ref[...] = jnp.zeros_like(acc_ref)

    xq = xq_ref[0]                      # (tq, E)  input dtype (bf16 or f32)
    xkv = xkv_ref[0]                    # (T,  E)
    dt = xq.dtype
    tq = xq.shape[0]
    t_kv = xkv.shape[0]
    hs = wq_ref.shape[2]

    # Per-head Q/K/V projections; the head slice was selected by the BlockSpec
    # (HBM-side DMA), not by lane slicing.  MXU accumulates in f32.
    scale = hs ** -0.5
    q = (jnp.dot(xq, wq_ref[0], preferred_element_type=jnp.float32) * scale).astype(dt)
    k = jnp.dot(xkv, wk_ref[0], preferred_element_type=jnp.float32).astype(dt)
    v = jnp.dot(xkv, wv_ref[0], preferred_element_type=jnp.float32).astype(dt)

    # Scores (tq, T): q @ k^T expressed via dot_general (no explicit transpose op),
    # f32 accumulation on the MXU.
    s = lax.dot_general(q, k, (((1,), (1,)), ((), ())),
                        preferred_element_type=jnp.float32)

    # Causal mask with a finite large negative (NaN-safe under future kv tiling).
    row = qi * tq + lax.broadcasted_iota(jnp.int32, (tq, t_kv), 0)
    col = lax.broadcasted_iota(jnp.int32, (tq, t_kv), 1)
    s = jnp.where(row >= col, s, -1e30)

    # Numerically stable softmax; 1/l normalization folded in after the PV matmul.
    m = jnp.max(s, axis=-1, keepdims=True)
    p = jnp.exp(s - m)
    l = jnp.sum(p, axis=-1, keepdims=True)
    o = jnp.dot(p.astype(dt), v, preferred_element_type=jnp.float32)     # (tq, hs)
    o = o * pl.reciprocal(l, approx=True)

    # Fold the output projection: accumulate this head's (tq, E) contribution in f32.
    acc_ref[...] += jnp.dot(o.astype(dt), wp_ref[0],
                            preferred_element_type=jnp.float32)

    @pl.when(h == pl.num_programs(2) - 1)
    def _finalize():
        o_ref[0] = (acc_ref[...] + bp_ref[...].astype(jnp.float32)).astype(o_ref.dtype)


def multi_head_attention(x, wq, wk, wv, wproj, bproj, *, num_heads, q_tile=None):
    """x: (B, T, E); wq/wk/wv/wproj: (E, E) with y = x @ W; bproj: (1, E) or (E,)."""
    B, T, E = x.shape
    assert E % num_heads == 0
    hs = E // num_heads

    if q_tile is None:
        if T <= 256:
            q_tile = T
        elif T % 256 == 0:
            q_tile = 256
        elif T % 128 == 0:
            q_tile = 128
        else:
            q_tile = T
    assert T % q_tile == 0, "q_tile must divide T"

    # One-time HBM-side weight re-layouts so the kernel never lane-slices heads:
    #   wq3/wk3/wv3: (H, E, hs)  with wq3[h] == wq[:, h*hs:(h+1)*hs]
    #   wp3:         (H, hs, E)  with wp3[h] == wproj[h*hs:(h+1)*hs, :]
    def split_in(w):
        return w.reshape(E, num_heads, hs).transpose(1, 0, 2)

    wq3, wk3, wv3 = split_in(wq), split_in(wk), split_in(wv)
    wp3 = wproj.reshape(num_heads, hs, E)
    bp = bproj.reshape(1, E)

    # Explicit VMEM budget (pipeline double-buffers each block) + f32 scratch +
    # in-kernel intermediates; clamped so it is safe on v7x's 64 MiB physical VMEM.
    isz = x.dtype.itemsize
    est = (2 * (q_tile * E * isz          # x (Q rows)
                + T * E * isz             # x (K/V rows)
                + 4 * E * hs * isz        # per-head Wq, Wk, Wv, Wproj slices
                + E * isz                 # bias
                + q_tile * E * isz)       # output block
           + q_tile * E * 4               # f32 accumulator scratch
           + 2 * T * hs * isz             # k, v
           + 2 * q_tile * T * 4)          # scores / probs (f32)
    vmem_limit = int(min(max(4 * est, 32 * 1024 * 1024), 48 * 1024 * 1024))

    grid = (B, T // q_tile, num_heads)

    return pl.pallas_call(
        mha_kernel,
        out_shape=jax.ShapeDtypeStruct((B, T, E), x.dtype),
        grid_spec=pltpu.PrefetchScalarGridSpec(
            num_scalar_prefetch=0,
            grid=grid,
            in_specs=[
                pl.BlockSpec((1, q_tile, E), lambda b, i, h: (b, i, 0)),  # x (Q rows)
                pl.BlockSpec((1, T, E), lambda b, i, h: (b, 0, 0)),       # x (K/V rows)
                pl.BlockSpec((1, E, hs), lambda b, i, h: (h, 0, 0)),      # Wq[h]
                pl.BlockSpec((1, E, hs), lambda b, i, h: (h, 0, 0)),      # Wk[h]
                pl.BlockSpec((1, E, hs), lambda b, i, h: (h, 0, 0)),      # Wv[h]
                pl.BlockSpec((1, hs, E), lambda b, i, h: (h, 0, 0)),      # Wproj[h]
                pl.BlockSpec((1, E), lambda b, i, h: (0, 0)),             # bproj
            ],
            out_specs=pl.BlockSpec((1, q_tile, E), lambda b, i, h: (b, i, 0)),
            scratch_shapes=[pltpu.VMEM((q_tile, E), jnp.float32)],
        ),
        compiler_params=pltpu.CompilerParams(
            dimension_semantics=("parallel", "parallel", "arbitrary"),
            vmem_limit_bytes=vmem_limit,
        ),
    )(x, x, wq3, wk3, wv3, wp3, bp)


def reference_mha(x, wq, wk, wv, wproj, bproj, *, num_heads):
    """Pure-JAX f32 reference matching the PyTorch forward (dropout = identity)."""
    B, T, E = x.shape
    hs = E // num_heads
    xf = x.astype(jnp.float32)
    q = xf @ wq.astype(jnp.float32)
    k = xf @ wk.astype(jnp.float32)
    v = xf @ wv.astype(jnp.float32)
    causal = jnp.tril(jnp.ones((T, T), dtype=bool))
    outs = []
    for h in range(num_heads):
        sl = slice(h * hs, (h + 1) * hs)
        s = (q[..., sl] @ jnp.swapaxes(k[..., sl], -1, -2)) * hs ** (-0.5)
        s = jnp.where(causal, s, -jnp.inf)
        p = jax.nn.softmax(s, axis=-1)
        outs.append(p @ v[..., sl])
    cat = jnp.concatenate(outs, axis=-1)
    return cat @ wproj.astype(jnp.float32) + bproj.astype(jnp.float32).reshape(1, E)


if __name__ == "__main__":
    # Small shapes consistent with the module: batch=2, block_size(seq)=8,
    # num_embed=32, num_heads=4 -> head_size=8.
    B, T, E, H = 2, 8, 32, 4

    key = jax.random.PRNGKey(0)
    kx, kq, kk, kv, kp, kb = jax.random.split(key, 6)

    x = jax.random.normal(kx, (B, T, E), dtype=jnp.float32)
    wscale = 1.0 / jnp.sqrt(E)
    wq = jax.random.normal(kq, (E, E), dtype=jnp.float32) * wscale
    wk = jax.random.normal(kk, (E, E), dtype=jnp.float32) * wscale
    wv = jax.random.normal(kv, (E, E), dtype=jnp.float32) * wscale
    wproj = jax.random.normal(kp, (E, E), dtype=jnp.float32) * wscale
    bproj = jax.random.normal(kb, (1, E), dtype=jnp.float32) * 0.01

    # --- f32 path (tolerance absorbs pl.reciprocal(approx=True)) ---
    out = jax.block_until_ready(
        multi_head_attention(x, wq, wk, wv, wproj, bproj, num_heads=H))
    ref = reference_mha(x, wq, wk, wv, wproj, bproj, num_heads=H)
    assert out.shape == (B, T, E)
    assert jnp.allclose(out, ref, atol=5e-3, rtol=5e-3), "f32 mismatch vs JAX reference"

    # --- bf16 path (bf16 MXU operands, f32 accumulation in-kernel). Loose tolerance:
    #     this is a dtype-path smoke test; the f32 check above is the precision gate.
    bf = jnp.bfloat16
    xb, wqb, wkb, wvb, wpb, bpb = (a.astype(bf) for a in (x, wq, wk, wv, wproj, bproj))
    out16 = jax.block_until_ready(
        multi_head_attention(xb, wqb, wkb, wvb, wpb, bpb, num_heads=H))
    ref16 = reference_mha(xb, wqb, wkb, wvb, wpb, bpb, num_heads=H)
    assert out16.dtype == bf
    assert jnp.allclose(out16.astype(jnp.float32), ref16, atol=1e-1, rtol=1e-1), \
        "bf16 mismatch vs JAX reference"

    print("KERNEL_OK")
</pallas_src>

<mosaic_0001>
module attributes {stable_mosaic.version = 11 : i64} {
  func.func @mha_kernel(%arg0: i32, %arg1: i32, %arg2: i32, %arg3: memref<1x8x32xf32, #tpu.memory_space<vmem>>, %arg4: memref<1x8x32xf32, #tpu.memory_space<vmem>>, %arg5: memref<1x32x8xf32, #tpu.memory_space<vmem>>, %arg6: memref<1x32x8xf32, #tpu.memory_space<vmem>>, %arg7: memref<1x32x8xf32, #tpu.memory_space<vmem>>, %arg8: memref<1x8x32xf32, #tpu.memory_space<vmem>>, %arg9: memref<1x32xf32, #tpu.memory_space<vmem>>, %arg10: memref<1x8x32xf32, #tpu.memory_space<vmem>>, %arg11: memref<8x32xf32, #tpu.memory_space<vmem>>) attributes {dimension_semantics = [#tpu.dimension_semantics<parallel>, #tpu.dimension_semantics<parallel>, #tpu.dimension_semantics<arbitrary>], iteration_bounds = array<i64: 2, 1, 4>, scalar_prefetch = 0 : i64, scratch_operands = 1 : i64, tpu.core_type = #tpu.core_type<tc>, window_params = [{transform_indices = @transform_0, window_bounds = array<i64: 1, 8, 32>}, {transform_indices = @transform_1, window_bounds = array<i64: 1, 8, 32>}, {transform_indices = @transform_2, window_bounds = array<i64: 1, 32, 8>}, {transform_indices = @transform_3, window_bounds = array<i64: 1, 32, 8>}, {transform_indices = @transform_4, window_bounds = array<i64: 1, 32, 8>}, {transform_indices = @transform_5, window_bounds = array<i64: 1, 8, 32>}, {pipeline_mode = #tpu.pipeline_mode<synchronous>, transform_indices = @transform_6, window_bounds = array<i64: 1, 32>}, {transform_indices = @transform_7, window_bounds = array<i64: 1, 8, 32>}]} {
    %c0_i32 = arith.constant 0 : i32
    %0 = arith.cmpi eq, %arg2, %c0_i32 : i32
    %1 = arith.extui %0 : i1 to i32
    %c0_i32_0 = arith.constant 0 : i32
    %2 = arith.cmpi ne, %1, %c0_i32_0 : i32
    scf.if %2 {
      %cst_32 = arith.constant 0.000000e+00 : f32
      %47 = vector.broadcast %cst_32 : f32 to vector<8x32xf32>
      %c0_33 = arith.constant 0 : index
      %c0_34 = arith.constant 0 : index
      %48 = vector.load %arg11[%c0_33, %c0_34] : memref<8x32xf32, #tpu.memory_space<vmem>>, vector<8x32xf32>
      tpu.vector_store %arg11[%c0_33, %c0_34], %47 {strides = array<i32>} : memref<8x32xf32, #tpu.memory_space<vmem>>, vector<8x32xf32>,
    } else {
    }
    %c0 = arith.constant 0 : index
    %c0_1 = arith.constant 0 : index
    %c0_2 = arith.constant 0 : index
    %3 = vector.load %arg3[%c0, %c0_1, %c0_2] : memref<1x8x32xf32, #tpu.memory_space<vmem>>, vector<1x8x32xf32>
    %4 = vector.shape_cast %3 : vector<1x8x32xf32> to vector<8x32xf32>
    %c0_3 = arith.constant 0 : index
    %c0_4 = arith.constant 0 : index
    %c0_5 = arith.constant 0 : index
    %5 = vector.load %arg4[%c0_3, %c0_4, %c0_5] : memref<1x8x32xf32, #tpu.memory_space<vmem>>, vector<1x8x32xf32>
    %6 = vector.shape_cast %5 : vector<1x8x32xf32> to vector<8x32xf32>
    %c0_6 = arith.constant 0 : index
    %c0_7 = arith.constant 0 : index
    %c0_8 = arith.constant 0 : index
    %7 = vector.load %arg5[%c0_6, %c0_7, %c0_8] : memref<1x32x8xf32, #tpu.memory_space<vmem>>, vector<1x32x8xf32>
    %8 = vector.shape_cast %7 : vector<1x32x8xf32> to vector<32x8xf32>
    %cst = arith.constant dense<0.000000e+00> : vector<8x8xf32>
    %9 = tpu.matmul %4, %8, %cst {dimension_numbers = #tpu.dot_dimension_numbers<[1], [0], [0], [1], [0, 0, 1, 1], [], []>} : vector<8x32xf32>, vector<32x8xf32>, vector<8x8xf32> -> vector<8x8xf32>
    %cst_9 = arith.constant 0.353553385 : f32
    %10 = vector.broadcast %cst_9 : f32 to vector<8x8xf32>
    %11 = arith.mulf %9, %10 : vector<8x8xf32>
    %c0_10 = arith.constant 0 : index
    %c0_11 = arith.constant 0 : index
    %c0_12 = arith.constant 0 : index
    %12 = vector.load %arg6[%c0_10, %c0_11, %c0_12] : memref<1x32x8xf32, #tpu.memory_space<vmem>>, vector<1x32x8xf32>
    %13 = vector.shape_cast %12 : vector<1x32x8xf32> to vector<32x8xf32>
    %cst_13 = arith.constant dense<0.000000e+00> : vector<8x8xf32>
    %14 = tpu.matmul %6, %13, %cst_13 {dimension_numbers = #tpu.dot_dimension_numbers<[1], [0], [0], [1], [0, 0, 1, 1], [], []>} : vector<8x32xf32>, vector<32x8xf32>, vector<8x8xf32> -> vector<8x8xf32>
    %c0_14 = arith.constant 0 : index
    %c0_15 = arith.constant 0 : index
    %c0_16 = arith.constant 0 : index
    %15 = vector.load %arg7[%c0_14, %c0_15, %c0_16] : memref<1x32x8xf32, #tpu.memory_space<vmem>>, vector<1x32x8xf32>
    %16 = vector.shape_cast %15 : vector<1x32x8xf32> to vector<32x8xf32>
    %cst_17 = arith.constant dense<0.000000e+00> : vector<8x8xf32>
    %17 = tpu.matmul %6, %16, %cst_17 {dimension_numbers = #tpu.dot_dimension_numbers<[1], [0], [0], [1], [0, 0, 1, 1], [], []>} : vector<8x32xf32>, vector<32x8xf32>, vector<8x8xf32> -> vector<8x8xf32>
    %cst_18 = arith.constant dense<0.000000e+00> : vector<8x8xf32>
    %18 = tpu.matmul %11, %14, %cst_18 {dimension_numbers = #tpu.dot_dimension_numbers<[1], [1], [0], [0], [0, 0, 1, 0], [], []>} : vector<8x8xf32>, vector<8x8xf32>, vector<8x8xf32> -> vector<8x8xf32>
    %c8_i32 = arith.constant 8 : i32
    %19 = arith.muli %arg1, %c8_i32 : i32
    %20 = tpu.iota {dimensions = array<i32: 0>} : vector<8x8xi32>
    %21 = vector.broadcast %19 : i32 to vector<8x8xi32>
    %22 = arith.addi %21, %20 : vector<8x8xi32>
    %23 = tpu.iota {dimensions = array<i32: 1>} : vector<8x8xi32>
    %24 = arith.cmpi sge, %22, %23 : vector<8x8xi32>
    %cst_19 = arith.constant -1.000000e+30 : f32
    %25 = vector.broadcast %cst_19 : f32 to vector<8x8xf32>
    %26 = arith.select %24, %18, %25 : vector<8x8xi1>, vector<8x8xf32>
    %cst_20 = arith.constant dense<0xFF800000> : vector<8xf32>
    %27 = vector.multi_reduction <maximumf>, %26, %cst_20 [1] : vector<8x8xf32> to vector<8xf32>
    %28 = vector.shape_cast %27 : vector<8xf32> to vector<8x1xf32>
    %29 = vector.broadcast %28 : vector<8x1xf32> to vector<8x8xf32>
    %30 = arith.subf %26, %29 : vector<8x8xf32>
    %31 = math.exp %30 : vector<8x8xf32>
    %cst_21 = arith.constant dense<0.000000e+00> : vector<8xf32>
    %32 = vector.multi_reduction <add>, %31, %cst_21 [1] : vector<8x8xf32> to vector<8xf32>
    %33 = vector.shape_cast %32 : vector<8xf32> to vector<8x1xf32>
    %cst_22 = arith.constant dense<0.000000e+00> : vector<8x8xf32>
    %34 = tpu.matmul %31, %17, %cst_22 {dimension_numbers = #tpu.dot_dimension_numbers<[1], [0], [0], [1], [0, 0, 1, 1], [], []>} : vector<8x8xf32>, vector<8x8xf32>, vector<8x8xf32> -> vector<8x8xf32>
    %35 = tpu.reciprocal %33 {approx = true} : vector<8x1xf32> -> vector<8x1xf32>
    %36 = vector.broadcast %35 : vector<8x1xf32> to vector<8x8xf32>
    %37 = arith.mulf %34, %36 : vector<8x8xf32>
    %c0_23 = arith.constant 0 : index
    %c0_24 = arith.constant 0 : index
    %38 = vector.load %arg11[%c0_23, %c0_24] : memref<8x32xf32, #tpu.memory_space<vmem>>, vector<8x32xf32>
    %c0_25 = arith.constant 0 : index
    %c0_26 = arith.constant 0 : index
    %c0_27 = arith.constant 0 : index
    %39 = vector.load %arg8[%c0_25, %c0_26, %c0_27] : memref<1x8x32xf32, #tpu.memory_space<vmem>>, vector<1x8x32xf32>
    %40 = vector.shape_cast %39 : vector<1x8x32xf32> to vector<8x32xf32>
    %cst_28 = arith.constant dense<0.000000e+00> : vector<8x32xf32>
    %41 = tpu.matmul %37, %40, %cst_28 {dimension_numbers = #tpu.dot_dimension_numbers<[1], [0], [0], [1], [0, 0, 1, 1], [], []>} : vector<8x8xf32>, vector<8x32xf32>, vector<8x32xf32> -> vector<8x32xf32>
    %42 = arith.addf %38, %41 : vector<8x32xf32>
    %c0_29 = arith.constant 0 : index
    %c0_30 = arith.constant 0 : index
    %43 = vector.load %arg11[%c0_29, %c0_30] : memref<8x32xf32, #tpu.memory_space<vmem>>, vector<8x32xf32>
    tpu.vector_store %arg11[%c0_29, %c0_30], %42 {strides = array<i32>} : memref<8x32xf32, #tpu.memory_space<vmem>>, vector<8x32xf32>,
    %c3_i32 = arith.constant 3 : i32
    %44 = arith.cmpi eq, %arg2, %c3_i32 : i32
    %45 = arith.extui %44 : i1 to i32
    %c0_i32_31 = arith.constant 0 : i32
    %46 = arith.cmpi ne, %45, %c0_i32_31 : i32
    scf.if %46 {
      %c0_32 = arith.constant 0 : index
      %c0_33 = arith.constant 0 : index
      %47 = vector.load %arg11[%c0_32, %c0_33] : memref<8x32xf32, #tpu.memory_space<vmem>>, vector<8x32xf32>
      %c0_34 = arith.constant 0 : index
      %c0_35 = arith.constant 0 : index
      %48 = vector.load %arg9[%c0_34, %c0_35] : memref<1x32xf32, #tpu.memory_space<vmem>>, vector<1x32xf32>
      %49 = vector.broadcast %48 : vector<1x32xf32> to vector<8x32xf32>
      %50 = arith.addf %47, %49 : vector<8x32xf32>
      %c0_36 = arith.constant 0 : index
      %c0_37 = arith.constant 0 : index
      %c0_38 = arith.constant 0 : index
      %51 = vector.load %arg10[%c0_36, %c0_37, %c0_38] : memref<1x8x32xf32, #tpu.memory_space<vmem>>, vector<1x8x32xf32>
      %52 = vector.shape_cast %51 : vector<1x8x32xf32> to vector<8x32xf32>
      %53 = vector.shape_cast %50 : vector<8x32xf32> to vector<1x8x32xf32>
      tpu.vector_store %arg10[%c0_36, %c0_37, %c0_38], %53 {strides = array<i32>} : memref<1x8x32xf32, #tpu.memory_space<vmem>>, vector<1x8x32xf32>,
    } else {
    }
    return
  }
  func.func @transform_0(%arg0: i32, %arg1: i32, %arg2: i32) -> (i32, i32, i32) {
    %c0_i32 = arith.constant 0 : i32
    %c0_i32_0 = arith.constant 0 : i32
    return %arg0, %arg1, %c0_i32 : i32, i32, i32
  }
  func.func @transform_1(%arg0: i32, %arg1: i32, %arg2: i32) -> (i32, i32, i32) {
    %c0_i32 = arith.constant 0 : i32
    %c0_i32_0 = arith.constant 0 : i32
    %c0_i32_1 = arith.constant 0 : i32
    return %arg0, %c0_i32, %c0_i32_0 : i32, i32, i32
  }
  func.func @transform_2(%arg0: i32, %arg1: i32, %arg2: i32) -> (i32, i32, i32) {
    %c0_i32 = arith.constant 0 : i32
    %c0_i32_0 = arith.constant 0 : i32
    %c0_i32_1 = arith.constant 0 : i32
    return %arg2, %c0_i32, %c0_i32_0 : i32, i32, i32
  }
  func.func @transform_3(%arg0: i32, %arg1: i32, %arg2: i32) -> (i32, i32, i32) {
    %c0_i32 = arith.constant 0 : i32
    %c0_i32_0 = arith.constant 0 : i32
    %c0_i32_1 = arith.constant 0 : i32
    return %arg2, %c0_i32, %c0_i32_0 : i32, i32, i32
  }
  func.func @transform_4(%arg0: i32, %arg1: i32, %arg2: i32) -> (i32, i32, i32) {
    %c0_i32 = arith.constant 0 : i32
    %c0_i32_0 = arith.constant 0 : i32
    %c0_i32_1 = arith.constant 0 : i32
    return %arg2, %c0_i32, %c0_i32_0 : i32, i32, i32
  }
  func.func @transform_5(%arg0: i32, %arg1: i32, %arg2: i32) -> (i32, i32, i32) {
    %c0_i32 = arith.constant 0 : i32
    %c0_i32_0 = arith.constant 0 : i32
    %c0_i32_1 = arith.constant 0 : i32
    return %arg2, %c0_i32, %c0_i32_0 : i32, i32, i32
  }
  func.func @transform_6(%arg0: i32, %arg1: i32, %arg2: i32) -> (i32, i32) {
    %c0_i32 = arith.constant 0 : i32
    %c0_i32_0 = arith.constant 0 : i32
    %c0_i32_1 = arith.constant 0 : i32
    return %c0_i32, %c0_i32_0 : i32, i32
  }
  func.func @transform_7(%arg0: i32, %arg1: i32, %arg2: i32) -> (i32, i32, i32) {
    %c0_i32 = arith.constant 0 : i32
    %c0_i32_0 = arith.constant 0 : i32
    return %arg0, %arg1, %c0_i32 : i32, i32, i32
  }
}

</mosaic_0001>

<llo_original>
// kernel: tpu_custom_call.1
$region0: #{tpu_custom_call.1}
  #allocation0 [shape = 'u32[]', space=smem, size = 0x4, offset = 0x4, fixed_abs, tag = 'smem constant byte address 0x4 - core index']
  #allocation1 [shape = 'u32[144,128]{1,0:T(1,128)}', space=vmem, size = 0x12000, scoped, tag = 'internal scratch']
  #allocation2 [shape = 'f32[8,32]{1,0:T(8,128)}', space=vmem, size = 0x1000, scoped, tag = 'scratch operand']
  %s0 = inlined_call_operand.vmem [shape: f32[2,8,32], index: 0, kind: input, shape index: {}]
  %s1 = inlined_call_operand.vmem [shape: f32[2,8,32], index: 1, kind: input, shape index: {}]
  %s2 = inlined_call_operand.vmem [shape: f32[4,32,8], index: 2, kind: input, shape index: {}]
  %s3 = inlined_call_operand.vmem [shape: f32[4,32,8], index: 3, kind: input, shape index: {}]
  %s4 = inlined_call_operand.vmem [shape: f32[4,32,8], index: 4, kind: input, shape index: {}]
  %s5 = inlined_call_operand.vmem [shape: f32[4,8,32], index: 5, kind: input, shape index: {}]
  %s6 = inlined_call_operand.vmem [shape: f32[1,32], index: 6, kind: input, shape index: {}]
  %s7 = inlined_call_operand.hbm [shape: f32[2,8,32], index: 7, kind: output, shape index: {}]
  %s8 = sld [smem:[#allocation0]]
  $region69: #{tpu_custom_call.1} parent=0
    _
  %s10 = ssub.s32 1, %s8
  %s11 = scalar_select 0, %s10, %s8
  $region1: #{tpu_custom_call.1} parent=0
    #allocation3 [shape = 'u8[8192]{0}', space=vmem, size = 0x2000, scoped, tag = 'output window, operand 0']
    #allocation4 [shape = 's32[2]{0}', space=sflag, size = 0x8, scoped, tag = 'scoped memory for tpu_custom_call.1']
    %12 = vsyncpa [#allocation4], 0
    %s13 = scalar_lea.sflag [#allocation4], 1
    %14 = vsyncpa %s13, 0
    loop: start=0, step=1, limit=10
    $region2: #{tpu_custom_call.1} parent=1 // loop_pre_header
      _
    $region3: #{tpu_custom_call.1} parent=1 // loop_header
      %s16 = sphi 0, %s20
      %p17 = scmp.ge.s32.totalorder %s16, 10
      %s23 = sphi 0, %s42
      %s24 = sphi 0, %s38
      %s25 = sphi 0, %s34
      %s26 = sphi 0, %s23
      %s27 = sphi 0, %s24
      %s28 = sphi 0, %s25
      %s29 = sphi 0, %s26
      %s30 = sphi 0, %s27
      %s31 = sphi 0, %s28
      %s47 = sphi 0, %s49
      %s50 = sphi 0, %s47
      %s51 = sphi 0, %s50
      %s67 = sphi 0, %s51
      %s73 = sphi 0, %s75
      %s76 = sphi 0, %s73
      %s77 = sphi 0, %s76
      %s93 = sphi 0, %s77
      %s99 = sphi 0, %s101
      %s102 = sphi 0, %s99
      %s103 = sphi 0, %s102
      %s119 = sphi 0, %s103
      %s125 = sphi 0, %s127
      %s128 = sphi 0, %s125
      %s129 = sphi 0, %s128
      %s145 = sphi 0, %s129
      %s151 = sphi 0, %s153
      %s154 = sphi 0, %s151
      %s155 = sphi 0, %s154
      %s171 = sphi 0, %s155
      %s177 = sphi 0, %s179
      %s180 = sphi 0, %s177
      %s181 = sphi 0, %s180
      %s197 = sphi 0, %s181
      %s201 = sphi 0, %s201
      %s203 = sphi 0, %s201
      %s204 = sphi 0, %s203
      %s218 = sphi 0, %s204
      %s226 = sphi 0, %s228
      %s229 = sphi 0, %s226
      %s230 = sphi 0, %s229
      %s246 = sphi 0, %s230
    $region4: #{tpu_custom_call.1} parent=1 // loop_header_branch
      %19 = sbr.rel (%p17) target = $region8
    $region5: #{tpu_custom_call.1} parent=1 // loop_body
      %s21 = ssub.s32 %s16, 1
      %s22 = ssub.s32 %s16, 2
      %s32 = sadd.s32 1, %s25
      %p33 = scmp.ge.s32.totalorder %s32, 4
      %s34 = scalar_select %p33, 0, %s32
      %s35 = sadd.s32 1, %s24
      %s36 = scalar_select %p33, %s35, %s24
      %p37 = scmp.ge.s32.totalorder %s36, 1
      %s38 = scalar_select %p37, 0, %s36
      %s39 = sadd.s32 1, %s23
      %s40 = scalar_select %p37, %s39, %s23
      %p41 = scmp.ge.s32.totalorder %s40, 2
      %s42 = scalar_select %p41, 0, %s40
      %s43 = ssub.s32 %s23, %s42
      %s44 = ssub.s32 %s24, %s38
      %s45 = sor.u32 %s43, %s44
      %p46 = scmp.eq.s32.totalorder %s45, 0
      %s48 = sadd.s32 %s47, 1
      %s49 = scalar_select %p46, %s47, %s48
      %p52 = pneg %p46
      %p53 = scmp.eq.s32.totalorder %s16, 7
      %p54 = por %p52, %p53
      %p55 = scmp.ne.s32.totalorder %s47, %s50
      %p56 = scmp.eq.s32.totalorder %s16, 0
      %p57 = por %p55, %p56
      %p58 = scmp.ne.s32.totalorder %s47, %s50
      %p59 = scmp.eq.s32.totalorder %s21, 7
      %p60 = por %p58, %p59
      %p61 = scmp.ne.s32.totalorder %s50, %s51
      %p62 = scmp.eq.s32.totalorder %s21, 0
      %p63 = por %p61, %p62
      %p64 = scmp.ne.s32.totalorder %s50, %s51
      %p65 = scmp.eq.s32.totalorder %s22, 7
      %p66 = por %p64, %p65
      %p68 = scmp.ne.s32.totalorder %s51, %s67
      %p69 = scmp.eq.s32.totalorder %s22, 0
      %p70 = por %p68, %p69
      %s71 = ssub.s32 %s23, %s42
      %p72 = scmp.eq.s32.totalorder %s71, 0
      %s74 = sadd.s32 %s73, 1
      %s75 = scalar_select %p72, %s73, %s74
      %p78 = pneg %p72
      %p79 = scmp.eq.s32.totalorder %s16, 7
      %p80 = por %p78, %p79
      %p81 = scmp.ne.s32.totalorder %s73, %s76
      %p82 = scmp.eq.s32.totalorder %s16, 0
      %p83 = por %p81, %p82
      %p84 = scmp.ne.s32.totalorder %s73, %s76
      %p85 = scmp.eq.s32.totalorder %s21, 7
      %p86 = por %p84, %p85
      %p87 = scmp.ne.s32.totalorder %s76, %s77
      %p88 = scmp.eq.s32.totalorder %s21, 0
      %p89 = por %p87, %p88
      %p90 = scmp.ne.s32.totalorder %s76, %s77
      %p91 = scmp.eq.s32.totalorder %s22, 7
      %p92 = por %p90, %p91
      %p94 = scmp.ne.s32.totalorder %s77, %s93
      %p95 = scmp.eq.s32.totalorder %s22, 0
      %p96 = por %p94, %p95
      %s97 = ssub.s32 %s25, %s34
      %p98 = scmp.eq.s32.totalorder %s97, 0
      %s100 = sadd.s32 %s99, 1
      %s101 = scalar_select %p98, %s99, %s100
      %p104 = pneg %p98
      %p105 = scmp.eq.s32.totalorder %s16, 7
      %p106 = por %p104, %p105
      %p107 = scmp.ne.s32.totalorder %s99, %s102
      %p108 = scmp.eq.s32.totalorder %s16, 0
      %p109 = por %p107, %p108
      %p110 = scmp.ne.s32.totalorder %s99, %s102
      %p111 = scmp.eq.s32.totalorder %s21, 7
      %p112 = por %p110, %p111
      %p113 = scmp.ne.s32.totalorder %s102, %s103
      %p114 = scmp.eq.s32.totalorder %s21, 0
      %p115 = por %p113, %p114
      %p116 = scmp.ne.s32.totalorder %s102, %s103
      %p117 = scmp.eq.s32.totalorder %s22, 7
      %p118 = por %p116, %p117
      %p120 = scmp.ne.s32.totalorder %s103, %s119
      %p121 = scmp.eq.s32.totalorder %s22, 0
      %p122 = por %p120, %p121
      %s123 = ssub.s32 %s25, %s34
      %p124 = scmp.eq.s32.totalorder %s123, 0
      %s126 = sadd.s32 %s125, 1
      %s127 = scalar_select %p124, %s125, %s126
      %p130 = pneg %p124
      %p131 = scmp.eq.s32.totalorder %s16, 7
      %p132 = por %p130, %p131
      %p133 = scmp.ne.s32.totalorder %s125, %s128
      %p134 = scmp.eq.s32.totalorder %s16, 0
      %p135 = por %p133, %p134
      %p136 = scmp.ne.s32.totalorder %s125, %s128
      %p137 = scmp.eq.s32.totalorder %s21, 7
      %p138 = por %p136, %p137
      %p139 = scmp.ne.s32.totalorder %s128, %s129
      %p140 = scmp.eq.s32.totalorder %s21, 0
      %p141 = por %p139, %p140
      %p142 = scmp.ne.s32.totalorder %s128, %s129
      %p143 = scmp.eq.s32.totalorder %s22, 7
      %p144 = por %p142, %p143
      %p146 = scmp.ne.s32.totalorder %s129, %s145
      %p147 = scmp.eq.s32.totalorder %s22, 0
      %p148 = por %p146, %p147
      %s149 = ssub.s32 %s25, %s34
      %p150 = scmp.eq.s32.totalorder %s149, 0
      %s152 = sadd.s32 %s151, 1
      %s153 = scalar_select %p150, %s151, %s152
      %p156 = pneg %p150
      %p157 = scmp.eq.s32.totalorder %s16, 7
      %p158 = por %p156, %p157
      %p159 = scmp.ne.s32.totalorder %s151, %s154
      %p160 = scmp.eq.s32.totalorder %s16, 0
      %p161 = por %p159, %p160
      %p162 = scmp.ne.s32.totalorder %s151, %s154
      %p163 = scmp.eq.s32.totalorder %s21, 7
      %p164 = por %p162, %p163
      %p165 = scmp.ne.s32.totalorder %s154, %s155
      %p166 = scmp.eq.s32.totalorder %s21, 0
      %p167 = por %p165, %p166
      %p168 = scmp.ne.s32.totalorder %s154, %s155
      %p169 = scmp.eq.s32.totalorder %s22, 7
      %p170 = por %p168, %p169
      %p172 = scmp.ne.s32.totalorder %s155, %s171
      %p173 = scmp.eq.s32.totalorder %s22, 0
      %p174 = por %p172, %p173
      %s175 = ssub.s32 %s25, %s34
      %p176 = scmp.eq.s32.totalorder %s175, 0
      %s178 = sadd.s32 %s177, 1
      %s179 = scalar_select %p176, %s177, %s178
      %p182 = pneg %p176
      %p183 = scmp.eq.s32.totalorder %s16, 7
      %p184 = por %p182, %p183
      %p185 = scmp.ne.s32.totalorder %s177, %s180
      %p186 = scmp.eq.s32.totalorder %s16, 0
      %p187 = por %p185, %p186
      %p188 = scmp.ne.s32.totalorder %s177, %s180
      %p189 = scmp.eq.s32.totalorder %s21, 7
      %p190 = por %p188, %p189
      %p191 = scmp.ne.s32.totalorder %s180, %s181
      %p192 = scmp.eq.s32.totalorder %s21, 0
      %p193 = por %p191, %p192
      %p194 = scmp.ne.s32.totalorder %s180, %s181
      %p195 = scmp.eq.s32.totalorder %s22, 7
      %p196 = por %p194, %p195
      %p198 = scmp.ne.s32.totalorder %s181, %s197
      %p199 = scmp.eq.s32.totalorder %s22, 0
      %p200 = por %p198, %p199
      %s202 = sadd.s32 %s201, 1
      %p205 = scmp.eq.s32.totalorder %s16, 7
      %p206 = scmp.ne.s32.totalorder %s201, %s203
      %p207 = scmp.eq.s32.totalorder %s16, 0
      %p208 = por %p206, %p207
      %p209 = scmp.ne.s32.totalorder %s201, %s203
      %p210 = scmp.eq.s32.totalorder %s21, 7
      %p211 = por %p209, %p210
      %p212 = scmp.ne.s32.totalorder %s203, %s204
      %p213 = scmp.eq.s32.totalorder %s21, 0
      %p214 = por %p212, %p213
      %p215 = scmp.ne.s32.totalorder %s203, %s204
      %p216 = scmp.eq.s32.totalorder %s22, 7
      %p217 = por %p215, %p216
      %p219 = scmp.ne.s32.totalorder %s204, %s218
      %p220 = scmp.eq.s32.totalorder %s22, 0
      %p221 = por %p219, %p220
      %s222 = ssub.s32 %s23, %s42
      %s223 = ssub.s32 %s24, %s38
      %s224 = sor.u32 %s222, %s223
      %p225 = scmp.eq.s32.totalorder %s224, 0
      %s227 = sadd.s32 %s226, 1
      %s228 = scalar_select %p225, %s226, %s227
      %p231 = pneg %p225
      %p232 = scmp.eq.s32.totalorder %s16, 7
      %p233 = por %p231, %p232
      %p234 = scmp.ne.s32.totalorder %s226, %s229
      %p235 = scmp.eq.s32.totalorder %s16, 0
      %p236 = por %p234, %p235
      %p237 = scmp.ne.s32.totalorder %s226, %s229
      %p238 = scmp.eq.s32.totalorder %s21, 7
      %p239 = por %p237, %p238
      %p240 = scmp.ne.s32.totalorder %s229, %s230
      %p241 = scmp.eq.s32.totalorder %s21, 0
      %p242 = por %p240, %p241
      %p243 = scmp.ne.s32.totalorder %s229, %s230
      %p244 = scmp.eq.s32.totalorder %s22, 7
      %p245 = por %p243, %p244
      %p247 = scmp.ne.s32.totalorder %s230, %s246
      %p248 = scmp.eq.s32.totalorder %s22, 0
      %p249 = por %p247, %p248
      %p250 = scmp.le.s32.totalorder 1, %s16
      %p251 = scmp.lt.s32.totalorder %s16, 9
      %p252 = pnand %p250, %p251
      %p253 = pneg %p252
      // Predicated region
      $region9: #{tpu_custom_call.1} parent=5 // pred_check
        _
      $region10: #{tpu_custom_call.1} parent=5 // pred_check_branch
        %255 = sbr.rel (%p252) target = $region12
      $region11: #{tpu_custom_call.1} parent=5 // pred_region
        %s256 = ssub.s32 %s16, 1
        // Predicated region
        $region13: #{tpu_custom_call.1} parent=11 // pred_check
          %p257 = pneg %p214
        $region14: #{tpu_custom_call.1} parent=11 // pred_check_branch
          %259 = sbr.rel (%p257) target = $region16
        $region15: #{tpu_custom_call.1} parent=11 // pred_region
          _
        $region16: #{tpu_custom_call.1} parent=11 // pred_fallthru
          _
      $region12: #{tpu_custom_call.1} parent=5 // pred_fallthru
        _
      %p260 = scmp.lt.s32.totalorder %s16, 8
      // Predicated region
      $region17: #{tpu_custom_call.1} parent=5 // pred_check
        %p261 = pneg %p260
      $region18: #{tpu_custom_call.1} parent=5 // pred_check_branch
        %263 = sbr.rel (%p261) target = $region20
      $region19: #{tpu_custom_call.1} parent=5 // pred_region
        // Predicated region
        $region21: #{tpu_custom_call.1} parent=19 // pred_check
          %p264 = pneg %p57
        $region22: #{tpu_custom_call.1} parent=19 // pred_check_branch
          %266 = sbr.rel (%p264) target = $region24
        $region23: #{tpu_custom_call.1} parent=19 // pred_region
          %p267 = scmp.lt.s32.totalorder %s23, 1
          %s268 = scalar_select %p267, %s23, 1
          %p269 = scmp.lt.s32.totalorder %s24, 0
          %s270 = scalar_select %p269, %s24, 0
          %s271 = sadd.s32 %s270, %s268
          %s272 = smul.addr %s271, 8
          %s273 = scalar_lea.vmem %s0, %s272
        $region24: #{tpu_custom_call.1} parent=19 // pred_fallthru
          _
        // Predicated region
        $region25: #{tpu_custom_call.1} parent=19 // pred_check
          %p274 = pneg %p83
        $region26: #{tpu_custom_call.1} parent=19 // pred_check_branch
          %276 = sbr.rel (%p274) target = $region28
        $region27: #{tpu_custom_call.1} parent=19 // pred_region
          %p277 = scmp.lt.s32.totalorder %s23, 1
          %s278 = scalar_select %p277, %s23, 1
          %s279 = smul.addr %s278, 8
          %s280 = scalar_lea.vmem %s1, %s279
        $region28: #{tpu_custom_call.1} parent=19 // pred_fallthru
          _
        // Predicated region
        $region29: #{tpu_custom_call.1} parent=19 // pred_check
          %p281 = pneg %p109
        $region30: #{tpu_custom_call.1} parent=19 // pred_check_branch
          %283 = sbr.rel (%p281) target = $region32
        $region31: #{tpu_custom_call.1} parent=19 // pred_region
          %p284 = scmp.lt.s32.totalorder %s25, 3
          %s285 = scalar_select %p284, %s25, 3
          %s286 = smul.addr %s285, 4
          %s287 = smul.addr %s286, 8
          %s288 = scalar_lea.vmem %s2, %s287
        $region32: #{tpu_custom_call.1} parent=19 // pred_fallthru
          _
        // Predicated region
        $region33: #{tpu_custom_call.1} parent=19 // pred_check
          %p289 = pneg %p135
        $region34: #{tpu_custom_call.1} parent=19 // pred_check_branch
          %291 = sbr.rel (%p289) target = $region36
        $region35: #{tpu_custom_call.1} parent=19 // pred_region
          %p292 = scmp.lt.s32.totalorder %s25, 3
          %s293 = scalar_select %p292, %s25, 3
          %s294 = smul.addr %s293, 4
          %s295 = smul.addr %s294, 8
          %s296 = scalar_lea.vmem %s3, %s295
        $region36: #{tpu_custom_call.1} parent=19 // pred_fallthru
          _
        // Predicated region
        $region37: #{tpu_custom_call.1} parent=19 // pred_check
          %p297 = pneg %p161
        $region38: #{tpu_custom_call.1} parent=19 // pred_check_branch
          %299 = sbr.rel (%p297) target = $region40
        $region39: #{tpu_custom_call.1} parent=19 // pred_region
          %p300 = scmp.lt.s32.totalorder %s25, 3
          %s301 = scalar_select %p300, %s25, 3
          %s302 = smul.addr %s301, 4
          %s303 = smul.addr %s302, 8
          %s304 = scalar_lea.vmem %s4, %s303
        $region40: #{tpu_custom_call.1} parent=19 // pred_fallthru
          _
        // Predicated region
        $region41: #{tpu_custom_call.1} parent=19 // pred_check
          %p305 = pneg %p187
        $region42: #{tpu_custom_call.1} parent=19 // pred_check_branch
          %307 = sbr.rel (%p305) target = $region44
        $region43: #{tpu_custom_call.1} parent=19 // pred_region
          %p308 = scmp.lt.s32.totalorder %s25, 3
          %s309 = scalar_select %p308, %s25, 3
          %s310 = smul.addr %s309, 8
          %s311 = scalar_lea.vmem %s5, %s310
        $region44: #{tpu_custom_call.1} parent=19 // pred_fallthru
          _
      $region20: #{tpu_custom_call.1} parent=5 // pred_fallthru
        _
      %p312 = scmp.le.s32.totalorder 1, %s16
      %p313 = scmp.lt.s32.totalorder %s16, 9
      %p314 = pnand %p312, %p313
      %p315 = pneg %p314
      // Predicated region
      $region45: #{tpu_custom_call.1} parent=5 // pred_check
        _
      $region46: #{tpu_custom_call.1} parent=5 // pred_check_branch
        %317 = sbr.rel (%p314) target = $region48
      $region47: #{tpu_custom_call.1} parent=5 // pred_region
        %s318 = ssub.s32 %s16, 1
        %p319 = scmp.lt.s32.totalorder %s26, 1
        %s320 = scalar_select %p319, %s26, 1
        %p321 = scmp.lt.s32.totalorder %s27, 0
        %s322 = scalar_select %p321, %s27, 0
        %s323 = sadd.s32 %s322, %s320
        %s324 = smul.addr %s323, 8
        %s325 = scalar_lea.vmem %s0, %s324
        %p326 = pneg %p63
        %p327 = pneg %p60
        %p328 = scmp.lt.s32.totalorder %s26, 1
        %s329 = scalar_select %p328, %s26, 1
        %s330 = smul.addr %s329, 8
        %s331 = scalar_lea.vmem %s1, %s330
        %p332 = pneg %p89
        %p333 = pneg %p86
        %p334 = scmp.lt.s32.totalorder %s28, 3
        %s335 = scalar_select %p334, %s28, 3
        %s336 = smul.addr %s335, 4
        %s337 = smul.addr %s336, 8
        %s338 = scalar_lea.vmem %s2, %s337
        %p339 = pneg %p115
        %p340 = pneg %p112
        %p341 = scmp.lt.s32.totalorder %s28, 3
        %s342 = scalar_select %p341, %s28, 3
        %s343 = smul.addr %s342, 4
        %s344 = smul.addr %s343, 8
        %s345 = scalar_lea.vmem %s3, %s344
        %p346 = pneg %p141
        %p347 = pneg %p138
        %p348 = scmp.lt.s32.totalorder %s28, 3
        %s349 = scalar_select %p348, %s28, 3
        %s350 = smul.addr %s349, 4
        %s351 = smul.addr %s350, 8
        %s352 = scalar_lea.vmem %s4, %s351
        %p353 = pneg %p167
        %p354 = pneg %p164
        %p355 = scmp.lt.s32.totalorder %s28, 3
        %s356 = scalar_select %p355, %s28, 3
        %s357 = smul.addr %s356, 8
        %s358 = scalar_lea.vmem %s5, %s357
        %p359 = pneg %p193
        %p360 = pneg %p190
        %p361 = pneg %p214
        %p362 = pneg %p211
        %p363 = pneg %p242
        %p364 = pneg %p239
        %s365 = sand.u32 %s229, 1
        %s366 = scalar_lea.sflag [#allocation4], %s365
        %s367 = sand.u32 %s229, 1
        %s368 = smul.addr %s367, 8
        %s369 = scalar_lea.vmem [#allocation3], %s368
        %p370 = scmp.lt.s32.totalorder %s26, 1
        %s371 = scalar_select %p370, %s26, 1
        %p372 = scmp.lt.s32.totalorder %s27, 0
        %s373 = scalar_select %p372, %s27, 0
        %s374 = sadd.s32 %s373, %s371
        %s375 = smul.addr %s374, 8
        %s376 = scalar_lea.vmem %s0, %s375
        %p377 = scmp.lt.s32.totalorder %s26, 1
        %s378 = scalar_select %p377, %s26, 1
        %s379 = smul.addr %s378, 8
        %s380 = scalar_lea.vmem %s1, %s379
        %p381 = scmp.lt.s32.totalorder %s28, 3
        %s382 = scalar_select %p381, %s28, 3
        %s383 = smul.addr %s382, 4
        %s384 = smul.addr %s383, 8
        %s385 = scalar_lea.vmem %s2, %s384
        %p386 = scmp.lt.s32.totalorder %s28, 3
        %s387 = scalar_select %p386, %s28, 3
        %s388 = smul.addr %s387, 4
        %s389 = smul.addr %s388, 8
        %s390 = scalar_lea.vmem %s3, %s389
        %p391 = scmp.lt.s32.totalorder %s28, 3
        %s392 = scalar_select %p391, %s28, 3
        %s393 = smul.addr %s392, 4
        %s394 = smul.addr %s393, 8
        %s395 = scalar_lea.vmem %s4, %s394
        %p396 = scmp.lt.s32.totalorder %s28, 3
        %s397 = scalar_select %p396, %s28, 3
        %s398 = smul.addr %s397, 8
        %s399 = scalar_lea.vmem %s5, %s398
        %p400 = scmp.eq.s32.totalorder %s28, 0
        // Predicated region
        $region49: #{tpu_custom_call.1} parent=47 // pred_check
          %p401 = pneg %p400
        $region50: #{tpu_custom_call.1} parent=47 // pred_check_branch
          %403 = sbr.rel (%p401) target = $region52
        $region51: #{tpu_custom_call.1} parent=47 // pred_region
          %vm404 = vcmask 261120
          %405 = vst.msk [vmem:[#allocation2] sm:$0xff] %vm404, 0.0
        $region52: #{tpu_custom_call.1} parent=47 // pred_fallthru
          _
        %v406 = vld [vmem:[%s376] sm:$0xff]
        %v407 = vld [vmem:[%s380] sm:$0xff]
        %v408 = vld [vmem:[%s385] sm:$0xff]
        %v409 = vld [vmem:[%s385 + $0x8] sm:$0xff]
        %v410 = vld [vmem:[%s385 + $0x10] sm:$0xff]
        %v411 = vld [vmem:[%s385 + $0x18] sm:$0xff]
        %vm412 = vcmask 261120
        %v414 = vsel %vm412, %v406, 0
        %416 = vmatprep.subr.mxu0 0.0
        %417 = vmatpush1.msra.mxu0 %v408
        %418 = vmatprep.subr.mxu0 0.0
        %419 = vmatpush1.msra.mxu0 %v409
        %420 = vmatprep.subr.mxu0 0.0
        %421 = vmatpush1.msra.mxu0 %v410
        %422 = vmatprep.subr.mxu0 0.0
        %423 = vmatpush1.msra.mxu0 %v411
        %424 = vmatprep.subr.mxu0 0.0
        %425 = vmatpush1.msra.mxu0 0.0
        %426 = vmatprep.subr.mxu0 0.0
        %427 = vmatpush1.msra.mxu0 0.0
        %428 = vmatprep.subr.mxu0 0.0
        %429 = vmatpush1.msra.mxu0 0.0
        %430 = vmatprep.subr.mxu0 0.0
        %431 = vmatpush1.msra.mxu0 0.0
        %432 = vmatprep.subr.mxu0 0.0
        %433 = vmatpush1.msra.mxu0 0.0
        %434 = vmatprep.subr.mxu0 0.0
        %435 = vmatpush1.msra.mxu0 0.0
        %436 = vmatprep.subr.mxu0 0.0
        %437 = vmatpush1.msra.mxu0 0.0
        %438 = vmatprep.subr.mxu0 0.0
        %439 = vmatpush1.msra.mxu0 0.0
        %440 = vmatprep.subr.mxu0 0.0
        %441 = vmatpush1.msra.mxu0 0.0
        %442 = vmatprep.subr.mxu0 0.0
        %443 = vmatpush1.msra.mxu0 0.0
        %444 = vmatprep.subr.mxu0 0.0
        %445 = vmatpush1.msra.mxu0 0.0
        %446 = vmatprep.subr.mxu0 0.0
        %447 = vmatpush1.msra.mxu0 0.0
        %448 = vmatprep.subr.mxu0 0.0
        %449 = vmatpush1.msra.mxu0 0.0
        %450 = vmatprep.subr.mxu0 0.0
        %451 = vmatpush1.msra.mxu0 0.0
        %452 = vmatprep.subr.mxu0 0.0
        %453 = vmatpush1.msra.mxu0 0.0
        %454 = vmatprep.subr.mxu0 0.0
        %455 = vmatpush1.msra.mxu0 0.0
        %456 = vmatprep.subr.mxu0 0.0
        %457 = vmatpush1.msra.mxu0 0.0
        %458 = vmatprep.subr.mxu0 0.0
        %459 = vmatpush1.msra.mxu0 0.0
        %460 = vmatprep.subr.mxu0 0.0
        %461 = vmatpush1.msra.mxu0 0.0
        %462 = vmatprep.subr.mxu0 0.0
        %463 = vmatpush1.msra.mxu0 0.0
        %464 = vmatprep.subr.mxu0 0.0
        %465 = vmatpush1.msra.mxu0 0.0
        %466 = vmatprep.subr.mxu0 0.0
        %467 = vmatpush1.msra.mxu0 0.0
        %468 = vmatprep.subr.mxu0 0.0
        %469 = vmatpush1.msra.mxu0 0.0
        %470 = vmatprep.subr.mxu0 0.0
        %471 = vmatpush1.msra.mxu0 0.0
        %472 = vmatprep.subr.mxu0 0.0
        %473 = vmatpush1.msra.mxu0 0.0
        %474 = vmatprep.subr.mxu0 0.0
        %475 = vmatpush1.msra.mxu0 0.0
        %476 = vmatprep.subr.mxu0 0.0
        %477 = vmatpush1.msra.mxu0 0.0
        %478 = vmatprep.subr.mxu0 0.0
        %479 = vmatpush1.msra.mxu0 0.0
        %480 = vmatprep.mubr.f32.mxu0 0.0
        %481 = vmatmul.mubr.f32.gmra.mrb[0].mxu0 %v414
        %v482 = vpop.f32.mrb[0].mxu0
        %v483 = vadd.f32 0.0, %v482
        %v484 = vpop.f32.mrb[0].mxu0
        %485 = vdwg.mxu0
        %v486 = vmul.f32 %v483, 0.35355338
        %v487 = vld [vmem:[%s390] sm:$0xff]
        %v488 = vld [vmem:[%s390 + $0x8] sm:$0xff]
        %v489 = vld [vmem:[%s390 + $0x10] sm:$0xff]
        %v490 = vld [vmem:[%s390 + $0x18] sm:$0xff]
        %v492 = vsel %vm412, %v407, 0
        %494 = vmatprep.subr.mxu0 0.0
        %495 = vmatpush1.msra.mxu0 %v487
        %496 = vmatprep.subr.mxu0 0.0
        %497 = vmatpush1.msra.mxu0 %v488
        %498 = vmatprep.subr.mxu0 0.0
        %499 = vmatpush1.msra.mxu0 %v489
        %500 = vmatprep.subr.mxu0 0.0
        %501 = vmatpush1.msra.mxu0 %v490
        %502 = vmatprep.subr.mxu0 0.0
        %503 = vmatpush1.msra.mxu0 0.0
        %504 = vmatprep.subr.mxu0 0.0
        %505 = vmatpush1.msra.mxu0 0.0
        %506 = vmatprep.subr.mxu0 0.0
        %507 = vmatpush1.msra.mxu0 0.0
        %508 = vmatprep.subr.mxu0 0.0
        %509 = vmatpush1.msra.mxu0 0.0
        %510 = vmatprep.subr.mxu0 0.0
        %511 = vmatpush1.msra.mxu0 0.0
        %512 = vmatprep.subr.mxu0 0.0
        %513 = vmatpush1.msra.mxu0 0.0
        %514 = vmatprep.subr.mxu0 0.0
        %515 = vmatpush1.msra.mxu0 0.0
        %516 = vmatprep.subr.mxu0 0.0
        %517 = vmatpush1.msra.mxu0 0.0
        %518 = vmatprep.subr.mxu0 0.0
        %519 = vmatpush1.msra.mxu0 0.0
        %520 = vmatprep.subr.mxu0 0.0
        %521 = vmatpush1.msra.mxu0 0.0
        %522 = vmatprep.subr.mxu0 0.0
        %523 = vmatpush1.msra.mxu0 0.0
        %524 = vmatprep.subr.mxu0 0.0
        %525 = vmatpush1.msra.mxu0 0.0
        %526 = vmatprep.subr.mxu0 0.0
        %527 = vmatpush1.msra.mxu0 0.0
        %528 = vmatprep.subr.mxu0 0.0
        %529 = vmatpush1.msra.mxu0 0.0
        %530 = vmatprep.subr.mxu0 0.0
        %531 = vmatpush1.msra.mxu0 0.0
        %532 = vmatprep.subr.mxu0 0.0
        %533 = vmatpush1.msra.mxu0 0.0
        %534 = vmatprep.subr.mxu0 0.0
        %535 = vmatpush1.msra.mxu0 0.0
        %536 = vmatprep.subr.mxu0 0.0
        %537 = vmatpush1.msra.mxu0 0.0
        %538 = vmatprep.subr.mxu0 0.0
        %539 = vmatpush1.msra.mxu0 0.0
        %540 = vmatprep.subr.mxu0 0.0
        %541 = vmatpush1.msra.mxu0 0.0
        %542 = vmatprep.subr.mxu0 0.0
        %543 = vmatpush1.msra.mxu0 0.0
        %544 = vmatprep.subr.mxu0 0.0
        %545 = vmatpush1.msra.mxu0 0.0
        %546 = vmatprep.subr.mxu0 0.0
        %547 = vmatpush1.msra.mxu0 0.0
        %548 = vmatprep.subr.mxu0 0.0
        %549 = vmatpush1.msra.mxu0 0.0
        %550 = vmatprep.subr.mxu0 0.0
        %551 = vmatpush1.msra.mxu0 0.0
        %552 = vmatprep.subr.mxu0 0.0
        %553 = vmatpush1.msra.mxu0 0.0
        %554 = vmatprep.subr.mxu0 0.0
        %555 = vmatpush1.msra.mxu0 0.0
        %556 = vmatprep.subr.mxu0 0.0
        %557 = vmatpush1.msra.mxu0 0.0
        %558 = vmatprep.mubr.f32.mxu0 0.0
        %559 = vmatmul.mubr.f32.gmra.mrb[0].mxu0 %v492
        %v560 = vpop.f32.mrb[0].mxu0
        %v561 = vadd.f32 0.0, %v560
        %v562 = vpop.f32.mrb[0].mxu0
        %563 = vdwg.mxu0
        %v564 = vld [vmem:[%s395] sm:$0xff]
        %v565 = vld [vmem:[%s395 + $0x8] sm:$0xff]
        %v566 = vld [vmem:[%s395 + $0x10] sm:$0xff]
        %v567 = vld [vmem:[%s395 + $0x18] sm:$0xff]
        %568 = vmatprep.subr.mxu0 0.0
        %569 = vmatpush1.msra.mxu0 %v564
        %570 = vmatprep.subr.mxu0 0.0
        %571 = vmatpush1.msra.mxu0 %v565
        %572 = vmatprep.subr.mxu0 0.0
        %573 = vmatpush1.msra.mxu0 %v566
        %574 = vmatprep.subr.mxu0 0.0
        %575 = vmatpush1.msra.mxu0 %v567
        %576 = vmatprep.subr.mxu0 0.0
        %577 = vmatpush1.msra.mxu0 0.0
        %578 = vmatprep.subr.mxu0 0.0
        %579 = vmatpush1.msra.mxu0 0.0
        %580 = vmatprep.subr.mxu0 0.0
        %581 = vmatpush1.msra.mxu0 0.0
        %582 = vmatprep.subr.mxu0 0.0
        %583 = vmatpush1.msra.mxu0 0.0
        %584 = vmatprep.subr.mxu0 0.0
        %585 = vmatpush1.msra.mxu0 0.0
        %586 = vmatprep.subr.mxu0 0.0
        %587 = vmatpush1.msra.mxu0 0.0
        %588 = vmatprep.subr.mxu0 0.0
        %589 = vmatpush1.msra.mxu0 0.0
        %590 = vmatprep.subr.mxu0 0.0
        %591 = vmatpush1.msra.mxu0 0.0
        %592 = vmatprep.subr.mxu0 0.0
        %593 = vmatpush1.msra.mxu0 0.0
        %594 = vmatprep.subr.mxu0 0.0
        %595 = vmatpush1.msra.mxu0 0.0
        %596 = vmatprep.subr.mxu0 0.0
        %597 = vmatpush1.msra.mxu0 0.0
        %598 = vmatprep.subr.mxu0 0.0
        %599 = vmatpush1.msra.mxu0 0.0
        %600 = vmatprep.subr.mxu0 0.0
        %601 = vmatpush1.msra.mxu0 0.0
        %602 = vmatprep.subr.mxu0 0.0
        %603 = vmatpush1.msra.mxu0 0.0
        %604 = vmatprep.subr.mxu0 0.0
        %605 = vmatpush1.msra.mxu0 0.0
        %606 = vmatprep.subr.mxu0 0.0
        %607 = vmatpush1.msra.mxu0 0.0
        %608 = vmatprep.subr.mxu0 0.0
        %609 = vmatpush1.msra.mxu0 0.0
        %610 = vmatprep.subr.mxu0 0.0
        %611 = vmatpush1.msra.mxu0 0.0
        %612 = vmatprep.subr.mxu0 0.0
        %613 = vmatpush1.msra.mxu0 0.0
        %614 = vmatprep.subr.mxu0 0.0
        %615 = vmatpush1.msra.mxu0 0.0
        %616 = vmatprep.subr.mxu0 0.0
        %617 = vmatpush1.msra.mxu0 0.0
        %618 = vmatprep.subr.mxu0 0.0
        %619 = vmatpush1.msra.mxu0 0.0
        %620 = vmatprep.subr.mxu0 0.0
        %621 = vmatpush1.msra.mxu0 0.0
        %622 = vmatprep.subr.mxu0 0.0
        %623 = vmatpush1.msra.mxu0 0.0
        %624 = vmatprep.subr.mxu0 0.0
        %625 = vmatpush1.msra.mxu0 0.0
        %626 = vmatprep.subr.mxu0 0.0
        %627 = vmatpush1.msra.mxu0 0.0
        %628 = vmatprep.subr.mxu0 0.0
        %629 = vmatpush1.msra.mxu0 0.0
        %630 = vmatprep.subr.mxu0 0.0
        %631 = vmatpush1.msra.mxu0 0.0
        %632 = vmatprep.mubr.f32.mxu0 0.0
        %633 = vmatmul.mubr.f32.gmra.mrb[0].mxu0 %v492
        %v634 = vpop.f32.mrb[0].mxu0
        %v635 = vadd.f32 0.0, %v634
        %v636 = vpop.f32.mrb[0].mxu0
        %637 = vdwg.mxu0
        %vm638 = vcmask 64512
        %v640 = vsel %vm638, %v486, 0
        %v643 = vsel %vm638, %v561, 0
        %645 = vmatprep.subr.mxu0 0.0
        %646 = vmatpush1.xpose.msra.mxu0 %v643
        %647 = vmatprep.subr.mxu0 0.0
        %648 = vmatpush1.xpose.msra.mxu0 0.0
        %649 = vmatprep.subr.mxu0 0.0
        %650 = vmatpush1.xpose.msra.mxu0 0.0
        %651 = vmatprep.subr.mxu0 0.0
        %652 = vmatpush1.xpose.msra.mxu0 0.0
        %653 = vmatprep.subr.mxu0 0.0
        %654 = vmatpush1.xpose.msra.mxu0 0.0
        %655 = vmatprep.subr.mxu0 0.0
        %656 = vmatpush1.xpose.msra.mxu0 0.0
        %657 = vmatprep.subr.mxu0 0.0
        %658 = vmatpush1.xpose.msra.mxu0 0.0
        %659 = vmatprep.subr.mxu0 0.0
        %660 = vmatpush1.xpose.msra.mxu0 0.0
        %661 = vmatprep.subr.mxu0 0.0
        %662 = vmatpush1.xpose.msra.mxu0 0.0
        %663 = vmatprep.subr.mxu0 0.0
        %664 = vmatpush1.xpose.msra.mxu0 0.0
        %665 = vmatprep.subr.mxu0 0.0
        %666 = vmatpush1.xpose.msra.mxu0 0.0
        %667 = vmatprep.subr.mxu0 0.0
        %668 = vmatpush1.xpose.msra.mxu0 0.0
        %669 = vmatprep.subr.mxu0 0.0
        %670 = vmatpush1.xpose.msra.mxu0 0.0
        %671 = vmatprep.subr.mxu0 0.0
        %672 = vmatpush1.xpose.msra.mxu0 0.0
        %673 = vmatprep.subr.mxu0 0.0
        %674 = vmatpush1.xpose.msra.mxu0 0.0
        %675 = vmatprep.subr.mxu0 0.0
        %676 = vmatpush1.xpose.msra.mxu0 0.0
        %677 = vmatprep.subr.mxu0 0.0
        %678 = vmatpush1.xpose.msra.mxu0 0.0
        %679 = vmatprep.subr.mxu0 0.0
        %680 = vmatpush1.xpose.msra.mxu0 0.0
        %681 = vmatprep.subr.mxu0 0.0
        %682 = vmatpush1.xpose.msra.mxu0 0.0
        %683 = vmatprep.subr.mxu0 0.0
        %684 = vmatpush1.xpose.msra.mxu0 0.0
        %685 = vmatprep.subr.mxu0 0.0
        %686 = vmatpush1.xpose.msra.mxu0 0.0
        %687 = vmatprep.subr.mxu0 0.0
        %688 = vmatpush1.xpose.msra.mxu0 0.0
        %689 = vmatprep.subr.mxu0 0.0
        %690 = vmatpush1.xpose.msra.mxu0 0.0
        %691 = vmatprep.subr.mxu0 0.0
        %692 = vmatpush1.xpose.msra.mxu0 0.0
        %693 = vmatprep.subr.mxu0 0.0
        %694 = vmatpush1.xpose.msra.mxu0 0.0
        %695 = vmatprep.subr.mxu0 0.0
        %696 = vmatpush1.xpose.msra.mxu0 0.0
        %697 = vmatprep.subr.mxu0 0.0
        %698 = vmatpush1.xpose.msra.mxu0 0.0
        %699 = vmatprep.subr.mxu0 0.0
        %700 = vmatpush1.xpose.msra.mxu0 0.0
        %701 = vmatprep.subr.mxu0 0.0
        %702 = vmatpush1.xpose.msra.mxu0 0.0
        %703 = vmatprep.subr.mxu0 0.0
        %704 = vmatpush1.xpose.msra.mxu0 0.0
        %705 = vmatprep.subr.mxu0 0.0
        %706 = vmatpush1.xpose.msra.mxu0 0.0
        %707 = vmatprep.subr.mxu0 0.0
        %708 = vmatpush1.xpose.msra.mxu0 0.0
        %709 = vmatprep.mubr.f32.mxu0 0.0
        %710 = vmatmul.mubr.f32.gmra.mrb[0].mxu0 %v640
        %v711 = vpop.f32.mrb[0].mxu0
        %v712 = vadd.f32 0.0, %v711
        %v713 = vpop.f32.mrb[0].mxu0
        %714 = vdwg.mxu0
        %s715 = smul.u32 %s27, 8
        %v716 = vlaneseq
        %v717 = vshrl.u32 %v716, 7
        %v718 = vstv %s715
        %v719 = vadd.s32 %v718, %v717
        %v720 = vlaneseq
        %v721 = vand.u32 %v720, 127
        %vm722 = vcmp.ge.s32.totalorder %v719, %v721
        %v723 = vsel %vm722, %v712, -1e+30
        %v724 = vsel %vm638, %v723, -inf
        %725 = vmax.xlane.f32.xlu0 %v724
        %v726 = vpop.xlane.xlu0 %725
        %v727 = vsub.f32 %v723, %v726
        %v728 = vmul.f32 %v727, 1.442695
        %v729 = vpow.pop %v728
        %v730 = vsel %vm638, %v729, 0.0
        %731 = vadd.xlane.f32.xlu0 %v730
        %v732 = vpop.xlane.xlu0 %731
        %v734 = vsel %vm638, %v729, 0
        %736 = vmatprep.subr.mxu0 0.0
        %737 = vmatpush1.msra.mxu0 %v635
        %738 = vmatprep.subr.mxu0 0.0
        %739 = vmatpush1.msra.mxu0 0.0
        %740 = vmatprep.subr.mxu0 0.0
        %741 = vmatpush1.msra.mxu0 0.0
        %742 = vmatprep.subr.mxu0 0.0
        %743 = vmatpush1.msra.mxu0 0.0
        %744 = vmatprep.subr.mxu0 0.0
        %745 = vmatpush1.msra.mxu0 0.0
        %746 = vmatprep.subr.mxu0 0.0
        %747 = vmatpush1.msra.mxu0 0.0
        %748 = vmatprep.subr.mxu0 0.0
        %749 = vmatpush1.msra.mxu0 0.0
        %750 = vmatprep.subr.mxu0 0.0
        %751 = vmatpush1.msra.mxu0 0.0
        %752 = vmatprep.subr.mxu0 0.0
        %753 = vmatpush1.msra.mxu0 0.0
        %754 = vmatprep.subr.mxu0 0.0
        %755 = vmatpush1.msra.mxu0 0.0
        %756 = vmatprep.subr.mxu0 0.0
        %757 = vmatpush1.msra.mxu0 0.0
        %758 = vmatprep.subr.mxu0 0.0
        %759 = vmatpush1.msra.mxu0 0.0
        %760 = vmatprep.subr.mxu0 0.0
        %761 = vmatpush1.msra.mxu0 0.0
        %762 = vmatprep.subr.mxu0 0.0
        %763 = vmatpush1.msra.mxu0 0.0
        %764 = vmatprep.subr.mxu0 0.0
        %765 = vmatpush1.msra.mxu0 0.0
        %766 = vmatprep.subr.mxu0 0.0
        %767 = vmatpush1.msra.mxu0 0.0
        %768 = vmatprep.subr.mxu0 0.0
        %769 = vmatpush1.msra.mxu0 0.0
        %770 = vmatprep.subr.mxu0 0.0
        %771 = vmatpush1.msra.mxu0 0.0
        %772 = vmatprep.subr.mxu0 0.0
        %773 = vmatpush1.msra.mxu0 0.0
        %774 = vmatprep.subr.mxu0 0.0
        %775 = vmatpush1.msra.mxu0 0.0
        %776 = vmatprep.subr.mxu0 0.0
        %777 = vmatpush1.msra.mxu0 0.0
        %778 = vmatprep.subr.mxu0 0.0
        %779 = vmatpush1.msra.mxu0 0.0
        %780 = vmatprep.subr.mxu0 0.0
        %781 = vmatpush1.msra.mxu0 0.0
        %782 = vmatprep.subr.mxu0 0.0
        %783 = vmatpush1.msra.mxu0 0.0
        %784 = vmatprep.subr.mxu0 0.0
        %785 = vmatpush1.msra.mxu0 0.0
        %786 = vmatprep.subr.mxu0 0.0
        %787 = vmatpush1.msra.mxu0 0.0
        %788 = vmatprep.subr.mxu0 0.0
        %789 = vmatpush1.msra.mxu0 0.0
        %790 = vmatprep.subr.mxu0 0.0
        %791 = vmatpush1.msra.mxu0 0.0
        %792 = vmatprep.subr.mxu0 0.0
        %793 = vmatpush1.msra.mxu0 0.0
        %794 = vmatprep.subr.mxu0 0.0
        %795 = vmatpush1.msra.mxu0 0.0
        %796 = vmatprep.subr.mxu0 0.0
        %797 = vmatpush1.msra.mxu0 0.0
        %798 = vmatprep.subr.mxu0 0.0
        %799 = vmatpush1.msra.mxu0 0.0
        %800 = vmatprep.mubr.f32.mxu0 0.0
        %801 = vmatmul.mubr.f32.gmra.mrb[0].mxu0 %v734
        %v802 = vpop.f32.mrb[0].mxu0
        %v803 = vadd.f32 0.0, %v802
        %v804 = vpop.f32.mrb[0].mxu0
        %805 = vdwg.mxu0
        %v806 = vrcp.pop %v732
        %v807 = vmul.f32 %v803, %v806
        %v808 = vld [vmem:[#allocation2] sm:$0xff]
        %v809 = vld [vmem:[%s399] sm:$0xff]
        %v811 = vsel %vm638, %v807, 0
        %813 = vmatprep.subr.mxu0 0.0
        %814 = vmatpush1.msra.mxu0 %v809
        %815 = vmatprep.subr.mxu0 0.0
        %816 = vmatpush1.msra.mxu0 0.0
        %817 = vmatprep.subr.mxu0 0.0
        %818 = vmatpush1.msra.mxu0 0.0
        %819 = vmatprep.subr.mxu0 0.0
        %820 = vmatpush1.msra.mxu0 0.0
        %821 = vmatprep.subr.mxu0 0.0
        %822 = vmatpush1.msra.mxu0 0.0
        %823 = vmatprep.subr.mxu0 0.0
        %824 = vmatpush1.msra.mxu0 0.0
        %825 = vmatprep.subr.mxu0 0.0
        %826 = vmatpush1.msra.mxu0 0.0
        %827 = vmatprep.subr.mxu0 0.0
        %828 = vmatpush1.msra.mxu0 0.0
        %829 = vmatprep.subr.mxu0 0.0
        %830 = vmatpush1.msra.mxu0 0.0
        %831 = vmatprep.subr.mxu0 0.0
        %832 = vmatpush1.msra.mxu0 0.0
        %833 = vmatprep.subr.mxu0 0.0
        %834 = vmatpush1.msra.mxu0 0.0
        %835 = vmatprep.subr.mxu0 0.0
        %836 = vmatpush1.msra.mxu0 0.0
        %837 = vmatprep.subr.mxu0 0.0
        %838 = vmatpush1.msra.mxu0 0.0
        %839 = vmatprep.subr.mxu0 0.0
        %840 = vmatpush1.msra.mxu0 0.0
        %841 = vmatprep.subr.mxu0 0.0
        %842 = vmatpush1.msra.mxu0 0.0
        %843 = vmatprep.subr.mxu0 0.0
        %844 = vmatpush1.msra.mxu0 0.0
        %845 = vmatprep.subr.mxu0 0.0
        %846 = vmatpush1.msra.mxu0 0.0
        %847 = vmatprep.subr.mxu0 0.0
        %848 = vmatpush1.msra.mxu0 0.0
        %849 = vmatprep.subr.mxu0 0.0
        %850 = vmatpush1.msra.mxu0 0.0
        %851 = vmatprep.subr.mxu0 0.0
        %852 = vmatpush1.msra.mxu0 0.0
        %853 = vmatprep.subr.mxu0 0.0
        %854 = vmatpush1.msra.mxu0 0.0
        %855 = vmatprep.subr.mxu0 0.0
        %856 = vmatpush1.msra.mxu0 0.0
        %857 = vmatprep.subr.mxu0 0.0
        %858 = vmatpush1.msra.mxu0 0.0
        %859 = vmatprep.subr.mxu0 0.0
        %860 = vmatpush1.msra.mxu0 0.0
        %861 = vmatprep.subr.mxu0 0.0
        %862 = vmatpush1.msra.mxu0 0.0
        %863 = vmatprep.subr.mxu0 0.0
        %864 = vmatpush1.msra.mxu0 0.0
        %865 = vmatprep.subr.mxu0 0.0
        %866 = vmatpush1.msra.mxu0 0.0
        %867 = vmatprep.subr.mxu0 0.0
        %868 = vmatpush1.msra.mxu0 0.0
        %869 = vmatprep.subr.mxu0 0.0
        %870 = vmatpush1.msra.mxu0 0.0
        %871 = vmatprep.subr.mxu0 0.0
        %872 = vmatpush1.msra.mxu0 0.0
        %873 = vmatprep.subr.mxu0 0.0
        %874 = vmatpush1.msra.mxu0 0.0
        %875 = vmatprep.subr.mxu0 0.0
        %876 = vmatpush1.msra.mxu0 0.0
        %877 = vmatprep.mubr.f32.mxu0 0.0
        %878 = vmatmul.mubr.f32.gmra.mrb[0].mxu0 %v811
        %v879 = vpop.f32.mrb[0].mxu0
        %v880 = vadd.f32 0.0, %v879
        %v881 = vpop.f32.mrb[0].mxu0
        %882 = vdwg.mxu0
        %v883 = vadd.f32 %v808, %v880
        %884 = vst.msk [vmem:[#allocation2] sm:$0xff] %vm412, %v883
        %p885 = scmp.eq.s32.totalorder %s28, 3
        // Predicated region
        $region53: #{tpu_custom_call.1} parent=47 // pred_check
          %p886 = pneg %p885
        $region54: #{tpu_custom_call.1} parent=47 // pred_check_branch
          %888 = sbr.rel (%p886) target = $region56
        $region55: #{tpu_custom_call.1} parent=47 // pred_region
          %v889 = vld [vmem:[#allocation2] sm:$0xff]
          %v890 = vld [vmem:[%s6] sm:$0x1]
          %v892 = vlaneseq
          %v893 = vshrl.u32 %v892, 7
          %v894 = vsub.s32 0, %v893
          %v895 = vrot.slane %v890, %v894
          %v897 = vadd.f32 %v889, %v895
          %898 = vst.msk [vmem:[%s369] sm:$0xff] %vm412, %v897
        $region56: #{tpu_custom_call.1} parent=47 // pred_fallthru
          _
        %s899 = sand.u32 %s229, 1
        %s900 = scalar_lea.sflag [#allocation4], %s899
        %s901 = sand.u32 %s229, 1
        %s902 = smul.addr %s901, 8
        %s903 = scalar_lea.vmem [#allocation3], %s902
        // Predicated region
        $region57: #{tpu_custom_call.1} parent=47 // pred_check
          %p904 = pneg %p239
        $region58: #{tpu_custom_call.1} parent=47 // pred_check_branch
          %906 = sbr.rel (%p904) target = $region60
        $region59: #{tpu_custom_call.1} parent=47 // pred_region
          %s908 = ssub.s32 128, 128
          %909 = vsyncadd %s900, %s908
          %s910 = sadd.s32 %s27, %s26
          %s911 = smul.addr %s910, 128
          %s912 = scalar_lea.hbm %s7, %s911
          %s914 = sshll.u32 %s903, 4
          %s915 = int_to_ptr.vmem [resolvable:$true] %s914
          %917 = dma.vmem_to_hbm [thread:$0]  %s915, 128, %s912, %s900
        $region60: #{tpu_custom_call.1} parent=47 // pred_fallthru
          _
      $region48: #{tpu_custom_call.1} parent=5 // pred_fallthru
        _
      %p918 = scmp.le.s32.totalorder 2, %s16
      // Predicated region
      $region61: #{tpu_custom_call.1} parent=5 // pred_check
        %p919 = pneg %p918
      $region62: #{tpu_custom_call.1} parent=5 // pred_check_branch
        %921 = sbr.rel (%p919) target = $region64
      $region63: #{tpu_custom_call.1} parent=5 // pred_region
        %s922 = ssub.s32 %s16, 2
        // Predicated region
        $region65: #{tpu_custom_call.1} parent=63 // pred_check
          %p923 = pneg %p245
        $region66: #{tpu_custom_call.1} parent=63 // pred_check_branch
          %925 = sbr.rel (%p923) target = $region68
        $region67: #{tpu_custom_call.1} parent=63 // pred_region
          %s926 = sand.u32 %s230, 1
          %s927 = scalar_lea.sflag [#allocation4], %s926
          %s928 = sand.u32 %s230, 1
          %s929 = smul.addr %s928, 8
          %s930 = scalar_lea.vmem [#allocation3], %s929
          %931 = dma.done %s927, 128
        $region68: #{tpu_custom_call.1} parent=63 // pred_fallthru
          _
      $region64: #{tpu_custom_call.1} parent=5 // pred_fallthru
        _
    $region6: #{tpu_custom_call.1} parent=1 // loop_footer
      %s20 = sadd.s32 1, %s16
    $region7: #{tpu_custom_call.1} parent=1 // loop_footer_branch
      %15 = sbr.rel target = $region3
    $region8: #{tpu_custom_call.1} parent=1 // loop_exit
      _
    %932 = vsyncpa [#allocation4], 1
    %s933 = scalar_lea.sflag [#allocation4], 1
    %934 = vsyncpa %s933, 1

</llo_original>
